<compile_context>
chip_gen: v7x
topology: tpu7x:2x2x1
jax: 0.10.0
libtpu: 0.0.40
codegen_flags: <defaults>
</compile_context>

<pallas_src>
import functools

import jax
import jax.numpy as jnp
from jax import lax
from jax.experimental import pallas as pl
from jax.experimental.pallas import tpu as pltpu


# ----------------------------------------------------------------------------
# Streaming kernel: read full (tile_n, V) logprob blocks, gather via cmp/select.
# Used for small V and for sub-32-bit logprob dtypes.
# ----------------------------------------------------------------------------
def _masked_nll_stream_kernel(lp_ref, tgt_ref, psum_ref, *, n_rows):
    """lp_ref:(tile_n,V) native dtype; tgt_ref:(tile_n,1) int32 (-1 = masked);
    psum_ref:(1,1,1) f32 per-grid-step partial sum."""
    g = pl.program_id(0)
    tile_n = lp_ref.shape[0]

    lp = lp_ref[...]                                        # (tile_n, V), native dtype
    tgt = tgt_ref[...]                                      # (tile_n, 1) int32

    # Kill garbage rows of the (unpadded) ragged tail block: their VMEM contents are
    # unspecified, so force their target to -1 (matches no lane).
    row = g * tile_n + lax.broadcasted_iota(jnp.int32, (tile_n, 1), 0)
    tgt = jnp.where(row < n_rows, tgt, -1)

    # gather(logprob, -1, tgt) via compare-against-lane-iota + select.
    col = lax.broadcasted_iota(jnp.int32, lp.shape, 1)      # (tile_n, V)
    masked = jnp.where(col == tgt, lp, jnp.zeros_like(lp))  # one non-zero per valid row
    sel = jnp.sum(masked, axis=-1, keepdims=True).astype(jnp.float32)   # exact (1 nz/row)

    psum_ref[0] = jnp.sum(sel, axis=0, keepdims=True)       # (1, 1)


# ----------------------------------------------------------------------------
# Gather kernel: logprob stays in HBM; one small DMA per row fetches only the
# 128-lane slab containing the target column.
# ----------------------------------------------------------------------------
def _masked_nll_gather_kernel(slab_ref, lane_ref, lp_hbm, psum_ref, buf_ref, sem):
    """slab_ref:(n_pad,) int32 SMEM (scalar prefetch) - slab start per row (in-bounds).
    lane_ref:(tile_n,1) int32 VMEM - target offset within the slab, -1 = masked/padded.
    lp_hbm:(N,V) logprob, raw HBM ref (pl.ANY).
    psum_ref:(1,1,1) f32 per-grid-step partial sum.
    buf_ref:(tile_n,slab_w) VMEM scratch; sem: shared DMA semaphore."""
    g = pl.program_id(0)
    tile_n, slab_w = buf_ref.shape
    n_rows = lp_hbm.shape[0]
    row0 = g * tile_n

    # Issue one small copy per row; all copies run concurrently on the DMA engines.
    @pl.loop(0, tile_n)
    def _issue(r):
        # Clamp padded tail rows to a valid source row; their lane target is -1 so
        # whatever gets fetched contributes exactly 0.
        src_row = jnp.minimum(row0 + r, n_rows - 1)
        start = slab_ref[row0 + r]
        pltpu.make_async_copy(
            lp_hbm.at[pl.ds(src_row, 1), pl.ds(start, slab_w)],
            buf_ref.at[pl.ds(r, 1), :],
            sem,
        ).start()

    # All copies have identical byte size, so waiting tile_n times with a same-shaped
    # descriptor drains the shared semaphore exactly.
    @pl.loop(0, tile_n)
    def _drain(r):
        pltpu.make_async_copy(
            lp_hbm.at[pl.ds(0, 1), pl.ds(0, slab_w)],
            buf_ref.at[pl.ds(r, 1), :],
            sem,
        ).wait()

    lp = buf_ref[...]                                       # (tile_n, slab_w)
    lane = lane_ref[...]                                    # (tile_n, 1) int32
    col = lax.broadcasted_iota(jnp.int32, lp.shape, 1)
    masked = jnp.where(col == lane, lp, jnp.zeros_like(lp))
    sel = jnp.sum(masked, axis=-1, keepdims=True).astype(jnp.float32)

    psum_ref[0] = jnp.sum(sel, axis=0, keepdims=True)       # (1, 1)


# ----------------------------------------------------------------------------
# Wrappers
# ----------------------------------------------------------------------------
def _vmem_capacity_bytes():
    try:
        return int(pltpu.get_tpu_info().vmem_capacity_bytes)
    except Exception:
        return 64 << 20            # conservative (v7x) fallback


def _stream_call(lp, tg, valid, tile_n, target_block_bytes):
    N, V = lp.shape
    itemsize = jnp.dtype(lp.dtype).itemsize
    sub = {1: 32, 2: 16}.get(itemsize, 8)                   # dtype-aware sublane rounding

    # Fold the mask into the targets: masked rows select no lane.
    tgt_m = jnp.where(valid, tg, -1).reshape(N, 1).astype(jnp.int32)

    vmem_cap = _vmem_capacity_bytes()
    tb = min(int(target_block_bytes), max((vmem_cap - (12 << 20)) // 3, 1 << 20))

    if tile_n is None:
        tile_n = max(sub, tb // max(1, V * itemsize))
    tile_n = max(sub, (int(tile_n) // sub) * sub)
    tile_n = min(tile_n, ((N + sub - 1) // sub) * sub)

    n_grid = -(-N // tile_n)
    block_bytes = tile_n * V * itemsize
    # Only the lp stream is double-buffered -> ~2.2x block + slack is enough.
    vmem_limit = int(2.5 * block_bytes) + (4 << 20)
    vmem_limit = int(max(16 << 20, min(vmem_limit, vmem_cap - (8 << 20), 100 << 20)))

    kernel = functools.partial(_masked_nll_stream_kernel, n_rows=N)
    return pl.pallas_call(
        kernel,
        out_shape=jax.ShapeDtypeStruct((n_grid, 1, 1), jnp.float32),
        grid=(n_grid,),
        in_specs=[
            pl.BlockSpec((tile_n, V), lambda g: (g, 0)),
            pl.BlockSpec((tile_n, 1), lambda g: (g, 0)),
        ],
        out_specs=pl.BlockSpec((1, 1, 1), lambda g: (g, 0, 0)),
        compiler_params=pltpu.CompilerParams(
            dimension_semantics=("parallel",),
            vmem_limit_bytes=vmem_limit,
        ),
    )(lp, tgt_m)


def _gather_call(lp, tg, valid, tile_n):
    N, V = lp.shape
    slab_w = min(128, V)

    # Per-row slab start (128-lane aligned, clamped in-bounds) and in-slab lane target.
    if V > slab_w:
        slab = jnp.clip((tg // slab_w) * slab_w, 0, V - slab_w)
    else:
        slab = jnp.zeros_like(tg)
    lane = jnp.where(valid, tg - slab, -1)                   # -1 -> contributes 0

    sub = 8
    if tile_n is None:
        tile_n = 512                                         # many outstanding row DMAs/step
    tile_n = max(sub, (int(tile_n) // sub) * sub)
    tile_n = min(tile_n, ((N + sub - 1) // sub) * sub)

    n_grid = -(-N // tile_n)
    n_pad = n_grid * tile_n
    if n_pad != N:                                           # pad only the tiny index arrays
        slab = jnp.pad(slab, (0, n_pad - N))
        lane = jnp.pad(lane, (0, n_pad - N), constant_values=-1)
    slab = slab.astype(jnp.int32)
    lane = lane.reshape(n_pad, 1).astype(jnp.int32)

    grid_spec = pltpu.PrefetchScalarGridSpec(
        num_scalar_prefetch=1,                               # slab starts -> SMEM
        grid=(n_grid,),
        in_specs=[
            pl.BlockSpec((tile_n, 1), lambda g, slab_ref: (g, 0)),   # lane targets (VMEM)
            pl.BlockSpec(memory_space=pl.ANY),                       # logprob stays in HBM
        ],
        out_specs=pl.BlockSpec((1, 1, 1), lambda g, slab_ref: (g, 0, 0)),
        scratch_shapes=[
            pltpu.VMEM((tile_n, slab_w), lp.dtype),
            pltpu.SemaphoreType.DMA(()),
        ],
    )
    return pl.pallas_call(
        _masked_nll_gather_kernel,
        out_shape=jax.ShapeDtypeStruct((n_grid, 1, 1), jnp.float32),
        grid_spec=grid_spec,
        compiler_params=pltpu.CompilerParams(
            dimension_semantics=("parallel",),
        ),
    )(slab, lane, lp)


def masked_nll_loss(logprob, tgt, mask, *, tile_n=None, use_gather=None,
                    target_block_bytes=6 << 20):
    """logprob: (..., V) float (f32/bf16); tgt: (..., 1) int; mask: (..., 1) {0,1}/bool.

    Returns scalar f32 = -(sum of logprob[target] over masked rows) / (number of masked rows).
    NOTE: sum(mask) == 0 yields NaN (PyTorch mean over empty masked_select).
    """
    V = logprob.shape[-1]
    lp = logprob.reshape(-1, V)                              # keep producer dtype on the wire
    tg = tgt.reshape(-1).astype(jnp.int32)
    mk = mask.reshape(-1)
    valid = mk != 0
    cnt = jnp.sum(valid.astype(jnp.float32))                 # denominator (trivial XLA reduce)

    N = lp.shape[0]
    itemsize = jnp.dtype(lp.dtype).itemsize

    if use_gather is None:
        use_gather = (itemsize == 4) and (V >= 1024)
    if use_gather and itemsize != 4:
        # TODO(synk): packed-dtype (bf16/fp8) row gather needs a u32-bitcast DMA trick;
        #             fall back to the streaming kernel for sub-32-bit logprob.
        use_gather = False

    if use_gather:
        psum = _gather_call(lp, tg, valid, tile_n)
    else:
        psum = _stream_call(lp, tg, valid, tile_n, target_block_bytes)

    return -(jnp.sum(psum) / cnt)


def _reference(logprob, tgt, mask):
    sel = jnp.take_along_axis(logprob.astype(jnp.float32), tgt, axis=-1)
    m = mask.astype(jnp.float32)
    return -(jnp.sum(sel * m) / jnp.sum(m))


if __name__ == "__main__":
    key = jax.random.PRNGKey(0)
    ks = jax.random.split(key, 12)

    # --- case 1: f32, V=128, divisible N -> streaming path -----------------
    B, T, V = 2, 8, 128
    logits = jax.random.normal(ks[0], (B, T, V), dtype=jnp.float32)
    logprob = jax.nn.log_softmax(logits, axis=-1)
    tgt = jax.random.randint(ks[1], (B, T, 1), 0, V, dtype=jnp.int32)
    mask = (jax.random.uniform(ks[2], (B, T, 1)) > 0.3).astype(jnp.int32)
    mask = mask.at[0, 0, 0].set(1)
    loss = jax.block_until_ready(masked_nll_loss(logprob, tgt, mask))
    ref = _reference(logprob, tgt, mask)
    assert jnp.allclose(loss, ref, rtol=1e-5, atol=1e-5), ("case1", loss, ref)

    # --- case 2: bf16 on the wire, ragged N=15 -> streaming, no pad --------
    B2, T2, V2 = 3, 5, 256
    logits2 = jax.random.normal(ks[3], (B2, T2, V2), dtype=jnp.float32)
    logprob2 = jax.nn.log_softmax(logits2, axis=-1).astype(jnp.bfloat16)
    tgt2 = jax.random.randint(ks[4], (B2, T2, 1), 0, V2, dtype=jnp.int32)
    mask2 = (jax.random.uniform(ks[5], (B2, T2, 1)) > 0.4).astype(jnp.int32)
    mask2 = mask2.at[0, 0, 0].set(1)
    loss2 = jax.block_until_ready(masked_nll_loss(logprob2, tgt2, mask2))
    ref2 = _reference(logprob2, tgt2, mask2)
    assert jnp.allclose(loss2, ref2, rtol=1e-3, atol=1e-3), ("case2", loss2, ref2)

    # --- case 3: f32, V=2048, ragged N=15 -> data-dependent gather path ----
    B3, T3, V3 = 3, 5, 2048
    logits3 = jax.random.normal(ks[6], (B3, T3, V3), dtype=jnp.float32)
    logprob3 = jax.nn.log_softmax(logits3, axis=-1)
    tgt3 = jax.random.randint(ks[7], (B3, T3, 1), 0, V3, dtype=jnp.int32)
    mask3 = (jax.random.uniform(ks[8], (B3, T3, 1)) > 0.5).astype(jnp.int32)
    mask3 = mask3.at[0, 0, 0].set(1)
    loss3 = jax.block_until_ready(masked_nll_loss(logprob3, tgt3, mask3))
    ref3 = _reference(logprob3, tgt3, mask3)
    assert jnp.allclose(loss3, ref3, rtol=1e-5, atol=1e-5), ("case3", loss3, ref3)

    # --- case 4: f32, V=200 (not multiple of 128), forced gather (slab clamp)
    B4, T4, V4 = 1, 9, 200
    logits4 = jax.random.normal(ks[9], (B4, T4, V4), dtype=jnp.float32)
    logprob4 = jax.nn.log_softmax(logits4, axis=-1)
    tgt4 = jax.random.randint(ks[10], (B4, T4, 1), 0, V4, dtype=jnp.int32)
    mask4 = (jax.random.uniform(ks[11], (B4, T4, 1)) > 0.4).astype(jnp.int32)
    mask4 = mask4.at[0, 0, 0].set(1)
    loss4 = jax.block_until_ready(masked_nll_loss(logprob4, tgt4, mask4, use_gather=True))
    ref4 = _reference(logprob4, tgt4, mask4)
    assert jnp.allclose(loss4, ref4, rtol=1e-5, atol=1e-5), ("case4", loss4, ref4)

    print("KERNEL_OK")
</pallas_src>

<mosaic_0001>
module attributes {stable_mosaic.version = 11 : i64} {
  func.func @_masked_nll_stream_kernel(%arg0: i32, %arg1: memref<16x128xf32, #tpu.memory_space<vmem>>, %arg2: memref<16x1xi32, #tpu.memory_space<vmem>>, %arg3: memref<1x1x1xf32, #tpu.memory_space<vmem>>) attributes {dimension_semantics = [#tpu.dimension_semantics<parallel>], iteration_bounds = array<i64: 1>, scalar_prefetch = 0 : i64, scratch_operands = 0 : i64, tpu.core_type = #tpu.core_type<tc>, window_params = [{transform_indices = @transform_0, window_bounds = array<i64: 16, 128>}, {transform_indices = @transform_1, window_bounds = array<i64: 16, 1>}, {transform_indices = @transform_2, window_bounds = array<i64: 1, 1, 1>}]} {
    %c0 = arith.constant 0 : index
    %c0_0 = arith.constant 0 : index
    %0 = vector.load %arg1[%c0, %c0_0] : memref<16x128xf32, #tpu.memory_space<vmem>>, vector<16x128xf32>
    %c0_1 = arith.constant 0 : index
    %c0_2 = arith.constant 0 : index
    %1 = vector.load %arg2[%c0_1, %c0_2] : memref<16x1xi32, #tpu.memory_space<vmem>>, vector<16x1xi32>
    %c16_i32 = arith.constant 16 : i32
    %2 = arith.muli %arg0, %c16_i32 : i32
    %3 = tpu.iota {dimensions = array<i32: 0>} : vector<16x1xi32>
    %4 = vector.broadcast %2 : i32 to vector<16x1xi32>
    %5 = arith.addi %4, %3 : vector<16x1xi32>
    %c16_i32_3 = arith.constant 16 : i32
    %6 = vector.broadcast %c16_i32_3 : i32 to vector<16x1xi32>
    %7 = arith.cmpi slt, %5, %6 : vector<16x1xi32>
    %c-1_i32 = arith.constant -1 : i32
    %8 = vector.broadcast %c-1_i32 : i32 to vector<16x1xi32>
    %9 = arith.select %7, %1, %8 : vector<16x1xi1>, vector<16x1xi32>
    %10 = tpu.iota {dimensions = array<i32: 1>} : vector<16x128xi32>
    %11 = vector.broadcast %9 : vector<16x1xi32> to vector<16x128xi32>
    %12 = arith.cmpi eq, %10, %11 : vector<16x128xi32>
    %cst = arith.constant 0.000000e+00 : f32
    %13 = vector.broadcast %cst : f32 to vector<16x128xf32>
    %14 = arith.select %12, %0, %13 : vector<16x128xi1>, vector<16x128xf32>
    %cst_4 = arith.constant dense<0.000000e+00> : vector<16xf32>
    %15 = vector.multi_reduction <add>, %14, %cst_4 [1] : vector<16x128xf32> to vector<16xf32>
    %16 = vector.shape_cast %15 : vector<16xf32> to vector<16x1xf32>
    %cst_5 = arith.constant dense<0.000000e+00> : vector<1xf32>
    %17 = vector.multi_reduction <add>, %16, %cst_5 [0] : vector<16x1xf32> to vector<1xf32>
    %18 = vector.shape_cast %17 : vector<1xf32> to vector<1x1xf32>
    %c0_6 = arith.constant 0 : index
    %c0_7 = arith.constant 0 : index
    %c0_8 = arith.constant 0 : index
    %19 = vector.load %arg3[%c0_6, %c0_7, %c0_8] : memref<1x1x1xf32, #tpu.memory_space<vmem>>, vector<1x1x1xf32>
    %20 = vector.shape_cast %19 : vector<1x1x1xf32> to vector<1x1xf32>
    %21 = vector.shape_cast %18 : vector<1x1xf32> to vector<1x1x1xf32>
    tpu.vector_store %arg3[%c0_6, %c0_7, %c0_8], %21 {strides = array<i32>} : memref<1x1x1xf32, #tpu.memory_space<vmem>>, vector<1x1x1xf32>,
    return
  }
  func.func @transform_0(%arg0: i32) -> (i32, i32) {
    %c0_i32 = arith.constant 0 : i32
    %c0_i32_0 = arith.constant 0 : i32
    return %arg0, %c0_i32 : i32, i32
  }
  func.func @transform_1(%arg0: i32) -> (i32, i32) {
    %c0_i32 = arith.constant 0 : i32
    %c0_i32_0 = arith.constant 0 : i32
    return %arg0, %c0_i32 : i32, i32
  }
  func.func @transform_2(%arg0: i32) -> (i32, i32, i32) {
    %c0_i32 = arith.constant 0 : i32
    %c0_i32_0 = arith.constant 0 : i32
    %c0_i32_1 = arith.constant 0 : i32
    return %arg0, %c0_i32, %c0_i32_0 : i32, i32, i32
  }
}

</mosaic_0001>

<llo_original>
// kernel: tpu_custom_call.1
$region0: #{tpu_custom_call.1}
  #allocation0 [shape = 'u32[]', space=smem, size = 0x4, offset = 0x4, fixed_abs, tag = 'smem constant byte address 0x4 - core index']
  #allocation1 [shape = 'u32[144,128]{1,0:T(1,128)}', space=vmem, size = 0x12000, scoped, tag = 'internal scratch']
  %s0 = inlined_call_operand.vmem [shape: f32[16,128], index: 0, kind: input, shape index: {}]
  %s1 = inlined_call_operand.vmem [shape: s32[16,1], index: 1, kind: input, shape index: {}]
  %s2 = inlined_call_operand.hbm [shape: f32[1,1,1], index: 2, kind: output, shape index: {}]
  %s3 = sld [smem:[#allocation0]]
  $region18: #{tpu_custom_call.1} parent=0
    _
  %s5 = ssub.s32 1, %s3
  %s6 = scalar_select 0, %s5, %s3
  $region1: #{tpu_custom_call.1} parent=0
    #allocation2 [shape = 'u8[512]{0}', space=vmem, size = 0x400, scoped, tag = 'output window, operand 0, single buffered']
    #allocation3 [shape = 's32[1]{0}', space=sflag, size = 0x4, scoped, tag = 'scoped memory for tpu_custom_call.1']
    %7 = vsyncpa [#allocation3], 0
    // Predicated region
    $region2: #{tpu_custom_call.1} parent=1 // pred_check
      _
    $region3: #{tpu_custom_call.1} parent=1 // pred_check_branch
      %9 = sbr.rel (0) target = $region5
    $region4: #{tpu_custom_call.1} parent=1 // pred_region
      _
    $region5: #{tpu_custom_call.1} parent=1 // pred_fallthru
      _
    // Predicated region
    $region6: #{tpu_custom_call.1} parent=1 // pred_check
      _
    $region7: #{tpu_custom_call.1} parent=1 // pred_check_branch
      %11 = sbr.rel (0) target = $region9
    $region8: #{tpu_custom_call.1} parent=1 // pred_region
      _
    $region9: #{tpu_custom_call.1} parent=1 // pred_fallthru
      _
    %v12 = vld [vmem:[%s0] sm:$0xff]
    %v13 = vld [vmem:[%s0 + $0x8] sm:$0xff]
    %v14 = vld [vmem:[%s1] sm:$0xff]
    %v15 = vld [vmem:[%s1 + $0x8] sm:$0xff]
    %s16 = smul.u32 0, 16
    %v17 = vlaneseq
    %v18 = vshrl.u32 %v17, 7
    %v19 = vadd.s32 %v18, 8
    %v20 = vstv %s16
    %v21 = vadd.s32 %v20, %v18
    %v22 = vadd.s32 %v20, %v19
    %vm23 = vcmp.lt.s32.totalorder %v21, 16
    %vm24 = vcmp.lt.s32.totalorder %v22, 16
    %v25 = vsel %vm23, %v14, 4294967295
    %v26 = vsel %vm24, %v15, 4294967295
    %v27 = vlaneseq
    %v28 = vand.u32 %v27, 127
    %29 = vset.pattern.permute.xlu0 0
    %30 = vperm.xlu0 %29, %v25
    %v31 = vpop.permute.xlu0 %30
    %32 = vset.pattern.permute.xlu0 0
    %33 = vperm.xlu0 %32, %v26
    %v34 = vpop.permute.xlu0 %33
    %vm35 = vcmp.eq.s32.totalorder %v28, %v31
    %vm36 = vcmp.eq.s32.totalorder %v28, %v34
    %v37 = vsel %vm35, %v12, 0.0
    %v38 = vsel %vm36, %v13, 0.0
    %39 = vadd.xlane.f32.xlu0 %v37
    %v40 = vpop.xlane.xlu0 %39
    %41 = vadd.xlane.f32.xlu0 %v38
    %v42 = vpop.xlane.xlu0 %41
    %v43 = vadd.f32 %v40, %v42
    %v44 = vrot.slane %v43, 4
    %v45 = vadd.f32 %v43, %v44
    %v46 = vrot.slane %v45, 2
    %v47 = vadd.f32 %v45, %v46
    %v48 = vrot.slane %v47, 1
    %v49 = vadd.f32 %v47, %v48
    %vm50 = vcmask 0
    %51 = vst.msk [vmem:[#allocation2] sm:$0x1] %vm50, %v49
    // Predicated region
    $region10: #{tpu_custom_call.1} parent=1 // pred_check
      _
    $region11: #{tpu_custom_call.1} parent=1 // pred_check_branch
      %53 = sbr.rel (0) target = $region13
    $region12: #{tpu_custom_call.1} parent=1 // pred_region
      %s55 = ssub.s32 16, 16
      %56 = vsyncadd [#allocation3], %s55
      %s58 = sshll.u32 [#allocation2], 4
      %s59 = int_to_ptr.vmem [resolvable:$true] %s58
      %61 = dma.vmem_to_hbm [thread:$0]  %s59, 16, %s2, [#allocation3]
    $region13: #{tpu_custom_call.1} parent=1 // pred_fallthru
      _
    // Predicated region
    $region14: #{tpu_custom_call.1} parent=1 // pred_check
      _
    $region15: #{tpu_custom_call.1} parent=1 // pred_check_branch
      %63 = sbr.rel (0) target = $region17
    $region16: #{tpu_custom_call.1} parent=1 // pred_region
      %64 = dma.done [#allocation3], 16
    $region17: #{tpu_custom_call.1} parent=1 // pred_fallthru
      _
    %65 = vsyncpa [#allocation3], 1

</llo_original>
